<compile_context>
chip_gen: v5e
topology: v5e:2x2
jax: 0.10.0
libtpu: 0.0.40
codegen_flags: <defaults>
</compile_context>

<pallas_src>
import functools

import jax
import jax.numpy as jnp
from jax.experimental import pallas as pl
from jax.experimental.pallas import tpu as pltpu


def _round_up(n, m):
    return ((n + m - 1) // m) * m


def _mlp_kernel(x_ref, w1_ref, b1_ref, w2_ref, b2_ref, o_ref):
    # x_ref:  [TB, F]   (input dtype, e.g. f32 -- cast to MXU dtype in-tile)
    # w1_ref: [F,  Hp]  (pre-transposed, zero-padded, compute dtype)
    # b1_ref: [1,  Hp]  (f32)
    # w2_ref: [Hp, Op]  (pre-transposed, zero-padded, compute dtype)
    # b2_ref: [1,  Op]  (f32)
    # o_ref:  [TB, O]   (unpadded output columns -> minimal HBM writeback)
    n_out = o_ref.shape[-1]
    x = x_ref[...].astype(w1_ref.dtype)                                # VPU cast, hidden under DMA
    h = jnp.dot(x, w1_ref[...], preferred_element_type=jnp.float32)   # [TB, Hp] on MXU
    h = h + b1_ref[...]                                                # f32 bias broadcast
    h = jnp.maximum(h, 0.0)                                            # f32 ReLU (VPU)
    h = h.astype(w2_ref.dtype)                                         # back to MXU dtype
    out = jnp.dot(h, w2_ref[...], preferred_element_type=jnp.float32)  # [TB, Op]
    out = out + b2_ref[...]
    o_ref[...] = out[:, :n_out].astype(o_ref.dtype)                    # store only real columns


def prepare_params(w1, b1, w2, b2, *, compute_dtype=jnp.bfloat16):
    """One-time weight layout prep. Call ONCE, outside the per-step hot path.

    w1: [H, F], b1: [H], w2: [O, H], b2: [O]   (PyTorch nn.Linear layout)
    Returns (w1t, b1p, w2t, b2p) pre-transposed, lane-dense (128-padded), cast.
    """
    H, F = w1.shape
    O = w2.shape[0]
    Hp = _round_up(H, 128)
    Op = _round_up(O, 128)
    w1t = jnp.zeros((F, Hp), compute_dtype).at[:, :H].set(w1.T.astype(compute_dtype))
    b1p = jnp.zeros((1, Hp), jnp.float32).at[:, :H].set(b1.astype(jnp.float32))
    w2t = jnp.zeros((Hp, Op), compute_dtype).at[:H, :O].set(w2.T.astype(compute_dtype))
    b2p = jnp.zeros((1, Op), jnp.float32).at[:, :O].set(b2.astype(jnp.float32))
    return w1t, b1p, w2t, b2p


def _choose_batch_tile(B, block_b):
    """Balanced batch tile: >=2 blocks when B allows (v7x megacore) and no
    near-2x work blow-up when B is just above block_b."""
    nb = pl.cdiv(B, block_b)
    if B > 8:
        nb = max(nb, 2)
    return _round_up(pl.cdiv(B, nb), 8)


def net_forward(x, w1t, b1p, w2t, b2p, *, n_output, block_b=1024):
    """Forward pass of Net on pre-prepared params (see prepare_params).

    x: [B, F]  (NOT copied / padded / cast in the wrapper)
    Returns [B, n_output] in x.dtype.
    """
    B, F = x.shape
    Hp = w1t.shape[1]
    Op = w2t.shape[1]

    TB = _choose_batch_tile(B, block_b)
    grid = (pl.cdiv(B, TB),)   # ragged last block: OOB rows never reach HBM

    return pl.pallas_call(
        _mlp_kernel,
        out_shape=jax.ShapeDtypeStruct((B, n_output), x.dtype),
        grid=grid,
        in_specs=[
            pl.BlockSpec((TB, F), lambda i: (i, 0)),    # x tile marches over batch
            pl.BlockSpec((F, Hp), lambda i: (0, 0)),    # weights stay resident
            pl.BlockSpec((1, Hp), lambda i: (0, 0)),
            pl.BlockSpec((Hp, Op), lambda i: (0, 0)),
            pl.BlockSpec((1, Op), lambda i: (0, 0)),
        ],
        out_specs=pl.BlockSpec((TB, n_output), lambda i: (i, 0)),
        compiler_params=pltpu.CompilerParams(
            dimension_semantics=("parallel",),
        ),
    )(x, w1t, b1p, w2t, b2p)


def init_params(key, n_feature, n_output, hidden=100, dtype=jnp.float32):
    """Deterministic PyTorch-Linear-style init: U(-1/sqrt(fan_in), 1/sqrt(fan_in))."""
    k1, k2, k3, k4 = jax.random.split(key, 4)
    bound1 = 1.0 / jnp.sqrt(jnp.float32(n_feature))
    bound2 = 1.0 / jnp.sqrt(jnp.float32(hidden))
    w1 = jax.random.uniform(k1, (hidden, n_feature), dtype, -bound1, bound1)
    b1 = jax.random.uniform(k2, (hidden,), dtype, -bound1, bound1)
    w2 = jax.random.uniform(k3, (n_output, hidden), dtype, -bound2, bound2)
    b2 = jax.random.uniform(k4, (n_output,), dtype, -bound2, bound2)
    return w1, b1, w2, b2


if __name__ == "__main__":
    key = jax.random.PRNGKey(0)
    kx, kx2, kp = jax.random.split(key, 3)

    n_feature = 4
    n_output = 2
    w1, b1, w2, b2 = init_params(kp, n_feature, n_output)

    # One-time layout prep (hoisted out of the forward hot path).
    params_f32 = prepare_params(w1, b1, w2, b2, compute_dtype=jnp.float32)
    params_bf16 = prepare_params(w1, b1, w2, b2, compute_dtype=jnp.bfloat16)

    fwd = jax.jit(functools.partial(net_forward, n_output=n_output))

    # --- f32 MXU operands, batch = multiple of 8 ---
    batch = 8
    x = jax.random.normal(kx, (batch, n_feature), dtype=jnp.float32)
    ref = jnp.maximum(x @ w1.T + b1, 0.0) @ w2.T + b2
    out = jax.block_until_ready(fwd(x, *params_f32))
    assert out.shape == (batch, n_output)
    assert jnp.allclose(out, ref, atol=1e-5, rtol=1e-5)

    # --- f32 operands, ragged batch (partial last block, no wrapper x copy) ---
    batch2 = 13
    x2 = jax.random.normal(kx2, (batch2, n_feature), dtype=jnp.float32)
    ref2 = jnp.maximum(x2 @ w1.T + b1, 0.0) @ w2.T + b2
    out2 = jax.block_until_ready(fwd(x2, *params_f32))
    assert out2.shape == (batch2, n_output)
    assert jnp.allclose(out2, ref2, atol=1e-5, rtol=1e-5)

    # --- bf16 MXU operands (default fast path), f32 accumulate + epilogue ---
    out_bf16 = jax.block_until_ready(fwd(x, *params_bf16))
    assert out_bf16.shape == (batch, n_output)
    assert jnp.allclose(out_bf16, ref, atol=2e-2, rtol=2e-2)

    print("KERNEL_OK")
</pallas_src>

<mosaic_0001>
module attributes {stable_mosaic.version = 11 : i64} {
  func.func @_mlp_kernel(%arg0: i32, %arg1: memref<8x4xf32, #tpu.memory_space<vmem>>, %arg2: memref<4x128xf32, #tpu.memory_space<vmem>>, %arg3: memref<1x128xf32, #tpu.memory_space<vmem>>, %arg4: memref<128x128xf32, #tpu.memory_space<vmem>>, %arg5: memref<1x128xf32, #tpu.memory_space<vmem>>, %arg6: memref<8x2xf32, #tpu.memory_space<vmem>>) attributes {dimension_semantics = [#tpu.dimension_semantics<parallel>], iteration_bounds = array<i64: 1>, scalar_prefetch = 0 : i64, scratch_operands = 0 : i64, tpu.core_type = #tpu.core_type<tc>, window_params = [{transform_indices = @transform_0, window_bounds = array<i64: 8, 4>}, {pipeline_mode = #tpu.pipeline_mode<synchronous>, transform_indices = @transform_1, window_bounds = array<i64: 4, 128>}, {pipeline_mode = #tpu.pipeline_mode<synchronous>, transform_indices = @transform_2, window_bounds = array<i64: 1, 128>}, {pipeline_mode = #tpu.pipeline_mode<synchronous>, transform_indices = @transform_3, window_bounds = array<i64: 128, 128>}, {pipeline_mode = #tpu.pipeline_mode<synchronous>, transform_indices = @transform_4, window_bounds = array<i64: 1, 128>}, {transform_indices = @transform_5, window_bounds = array<i64: 8, 2>}]} {
    %c0 = arith.constant 0 : index
    %c0_0 = arith.constant 0 : index
    %0 = vector.load %arg1[%c0, %c0_0] : memref<8x4xf32, #tpu.memory_space<vmem>>, vector<8x4xf32>
    %c0_1 = arith.constant 0 : index
    %c0_2 = arith.constant 0 : index
    %1 = vector.load %arg2[%c0_1, %c0_2] : memref<4x128xf32, #tpu.memory_space<vmem>>, vector<4x128xf32>
    %cst = arith.constant dense<0.000000e+00> : vector<8x128xf32>
    %2 = tpu.matmul %0, %1, %cst {dimension_numbers = #tpu.dot_dimension_numbers<[1], [0], [0], [1], [0, 0, 1, 1], [], []>} : vector<8x4xf32>, vector<4x128xf32>, vector<8x128xf32> -> vector<8x128xf32>
    %c0_3 = arith.constant 0 : index
    %c0_4 = arith.constant 0 : index
    %3 = vector.load %arg3[%c0_3, %c0_4] : memref<1x128xf32, #tpu.memory_space<vmem>>, vector<1x128xf32>
    %4 = vector.broadcast %3 : vector<1x128xf32> to vector<8x128xf32>
    %5 = arith.addf %2, %4 : vector<8x128xf32>
    %cst_5 = arith.constant 0.000000e+00 : f32
    %6 = vector.broadcast %cst_5 : f32 to vector<8x128xf32>
    %7 = arith.maximumf %5, %6 : vector<8x128xf32>
    %c0_6 = arith.constant 0 : index
    %c0_7 = arith.constant 0 : index
    %8 = vector.load %arg4[%c0_6, %c0_7] : memref<128x128xf32, #tpu.memory_space<vmem>>, vector<128x128xf32>
    %cst_8 = arith.constant dense<0.000000e+00> : vector<8x128xf32>
    %9 = tpu.matmul %7, %8, %cst_8 {dimension_numbers = #tpu.dot_dimension_numbers<[1], [0], [0], [1], [0, 0, 1, 1], [], []>} : vector<8x128xf32>, vector<128x128xf32>, vector<8x128xf32> -> vector<8x128xf32>
    %c0_9 = arith.constant 0 : index
    %c0_10 = arith.constant 0 : index
    %10 = vector.load %arg5[%c0_9, %c0_10] : memref<1x128xf32, #tpu.memory_space<vmem>>, vector<1x128xf32>
    %11 = vector.broadcast %10 : vector<1x128xf32> to vector<8x128xf32>
    %12 = arith.addf %9, %11 : vector<8x128xf32>
    %13 = vector.extract_strided_slice %12 {offsets = [0, 0], sizes = [8, 2], strides = [1, 1]} : vector<8x128xf32> to vector<8x2xf32>
    %c0_11 = arith.constant 0 : index
    %c0_12 = arith.constant 0 : index
    %14 = vector.load %arg6[%c0_11, %c0_12] : memref<8x2xf32, #tpu.memory_space<vmem>>, vector<8x2xf32>
    tpu.vector_store %arg6[%c0_11, %c0_12], %13 {strides = array<i32>} : memref<8x2xf32, #tpu.memory_space<vmem>>, vector<8x2xf32>,
    return
  }
  func.func @transform_0(%arg0: i32) -> (i32, i32) {
    %c0_i32 = arith.constant 0 : i32
    %c0_i32_0 = arith.constant 0 : i32
    return %arg0, %c0_i32 : i32, i32
  }
  func.func @transform_1(%arg0: i32) -> (i32, i32) {
    %c0_i32 = arith.constant 0 : i32
    %c0_i32_0 = arith.constant 0 : i32
    %c0_i32_1 = arith.constant 0 : i32
    return %c0_i32, %c0_i32_0 : i32, i32
  }
  func.func @transform_2(%arg0: i32) -> (i32, i32) {
    %c0_i32 = arith.constant 0 : i32
    %c0_i32_0 = arith.constant 0 : i32
    %c0_i32_1 = arith.constant 0 : i32
    return %c0_i32, %c0_i32_0 : i32, i32
  }
  func.func @transform_3(%arg0: i32) -> (i32, i32) {
    %c0_i32 = arith.constant 0 : i32
    %c0_i32_0 = arith.constant 0 : i32
    %c0_i32_1 = arith.constant 0 : i32
    return %c0_i32, %c0_i32_0 : i32, i32
  }
  func.func @transform_4(%arg0: i32) -> (i32, i32) {
    %c0_i32 = arith.constant 0 : i32
    %c0_i32_0 = arith.constant 0 : i32
    %c0_i32_1 = arith.constant 0 : i32
    return %c0_i32, %c0_i32_0 : i32, i32
  }
  func.func @transform_5(%arg0: i32) -> (i32, i32) {
    %c0_i32 = arith.constant 0 : i32
    %c0_i32_0 = arith.constant 0 : i32
    return %arg0, %c0_i32 : i32, i32
  }
}

</mosaic_0001>

<llo_original>
// kernel: net_forward.1
$region0: #{net_forward.1}
  #allocation0 [shape = 'u32[]', space=smem, size = 0x4, offset = 0x4, fixed_abs, tag = 'smem constant byte address 0x4 - core index']
  #allocation1 [shape = 'u32[72,128]{1,0:T(1,128)}', space=vmem, size = 0x9000, scoped, tag = 'internal scratch']
  %s0 = inlined_call_operand.vmem [shape: f32[8,4], index: 0, kind: input, shape index: {}]
  %s1 = inlined_call_operand.vmem [shape: f32[4,128], index: 1, kind: input, shape index: {}]
  %s2 = inlined_call_operand.vmem [shape: f32[1,128], index: 2, kind: input, shape index: {}]
  %s3 = inlined_call_operand.hbm [shape: f32[128,128], index: 3, kind: input, shape index: {}]
  %s4 = inlined_call_operand.vmem [shape: f32[1,128], index: 4, kind: input, shape index: {}]
  %s5 = inlined_call_operand.vmem [shape: f32[8,2], index: 5, kind: output, shape index: {}]
  %s6 = sld [smem:[#allocation0]]
  $region34: #{net_forward.1} parent=0
    _
  %s8 = ssub.s32 1, %s6
  %s9 = scalar_select 0, %s8, %s6
  $region1: #{net_forward.1} parent=0
    #allocation2 [shape = 'u8[65536]{0}', space=vmem, size = 0x10000, scoped, tag = 'input window, operand 3, single buffered']
    #allocation3 [shape = 's32[1]{0}', space=sflag, size = 0x4, scoped, tag = 'scoped memory for net_forward.1']
    %10 = vsyncpa [#allocation3], 0
    // Predicated region
    $region2: #{net_forward.1} parent=1 // pred_check
      _
    $region3: #{net_forward.1} parent=1 // pred_check_branch
      %12 = sbr.rel (0) target = $region5
    $region4: #{net_forward.1} parent=1 // pred_region
      _
    $region5: #{net_forward.1} parent=1 // pred_fallthru
      _
    // Predicated region
    $region6: #{net_forward.1} parent=1 // pred_check
      _
    $region7: #{net_forward.1} parent=1 // pred_check_branch
      %14 = sbr.rel (0) target = $region9
    $region8: #{net_forward.1} parent=1 // pred_region
      _
    $region9: #{net_forward.1} parent=1 // pred_fallthru
      _
    // Predicated region
    $region10: #{net_forward.1} parent=1 // pred_check
      _
    $region11: #{net_forward.1} parent=1 // pred_check_branch
      %16 = sbr.rel (0) target = $region13
    $region12: #{net_forward.1} parent=1 // pred_region
      _
    $region13: #{net_forward.1} parent=1 // pred_fallthru
      _
    // Predicated region
    $region14: #{net_forward.1} parent=1 // pred_check
      _
    $region15: #{net_forward.1} parent=1 // pred_check_branch
      %18 = sbr.rel (0) target = $region17
    $region16: #{net_forward.1} parent=1 // pred_region
      %20 = vsyncadd [#allocation3], 0
      %s21 = sshll.u32 %s3, 4
      %s22 = int_to_ptr.hbm [resolvable:$true] %s21
      %s23 = sshll.u32 [#allocation2], 4
      %s24 = int_to_ptr.vmem [resolvable:$true] %s23
      %29 = dma.hbm_to_vmem [thread:$0]  %s22, 2048, %s24, [#allocation3], 128, 128, 8
    $region17: #{net_forward.1} parent=1 // pred_fallthru
      _
    // Predicated region
    $region18: #{net_forward.1} parent=1 // pred_check
      _
    $region19: #{net_forward.1} parent=1 // pred_check_branch
      %31 = sbr.rel (0) target = $region21
    $region20: #{net_forward.1} parent=1 // pred_region
      _
    $region21: #{net_forward.1} parent=1 // pred_fallthru
      _
    // Predicated region
    $region22: #{net_forward.1} parent=1 // pred_check
      _
    $region23: #{net_forward.1} parent=1 // pred_check_branch
      %33 = sbr.rel (0) target = $region25
    $region24: #{net_forward.1} parent=1 // pred_region
      %35 = dma.done [#allocation3], 2048
    $region25: #{net_forward.1} parent=1 // pred_fallthru
      _
    %v36 = vld [vmem:[%s0] sm:$0xff]
    %v37 = vld [vmem:[%s1] sm:$0xf]
    %v38 = vld [vmem:[%s2] sm:$0x1]
    %v40 = vperm.slane %v38, 0
    %vm42 = vcmask 31744
    %v44 = vsel %vm42, %v36, 0
    %vm46 = vcmask 1043456
    %v48 = vsel %vm46, %v37, 0
    %50 = vmatpush.msra.mxu0 0.0
    %51 = vmatpush.msra.mxu0 0.0
    %52 = vmatpush.msra.mxu0 0.0
    %53 = vmatpush.msra.mxu0 0.0
    %54 = vmatpush.msra.mxu0 0.0
    %55 = vmatpush.msra.mxu0 0.0
    %56 = vmatpush.msra.mxu0 0.0
    %57 = vmatpush.msra.mxu0 0.0
    %58 = vmatpush.msra.mxu0 0.0
    %59 = vmatpush.msra.mxu0 0.0
    %60 = vmatpush.msra.mxu0 0.0
    %61 = vmatpush.msra.mxu0 0.0
    %62 = vmatpush.msra.mxu0 0.0
    %63 = vmatpush.msra.mxu0 0.0
    %64 = vmatpush.msra.mxu0 0.0
    %65 = vmatpush.msra.mxu0 %v48
    %66 = vmatmul.f32.gmra.mxu0 %v44
    %v67 = vpop.f32.mrf.mxu0
    %v68 = vadd.f32 %v40, %v67
    %69 = vdwg.mxu0
    %v70 = vmax.f32 %v68, 0.0
    %v71 = vld [vmem:[#allocation2] sm:$0xff]
    %v72 = vld [vmem:[#allocation2 + $0x8] sm:$0xff]
    %v73 = vld [vmem:[#allocation2 + $0x10] sm:$0xff]
    %v74 = vld [vmem:[#allocation2 + $0x18] sm:$0xff]
    %v75 = vld [vmem:[#allocation2 + $0x20] sm:$0xff]
    %v76 = vld [vmem:[#allocation2 + $0x28] sm:$0xff]
    %v77 = vld [vmem:[#allocation2 + $0x30] sm:$0xff]
    %v78 = vld [vmem:[#allocation2 + $0x38] sm:$0xff]
    %v79 = vld [vmem:[#allocation2 + $0x40] sm:$0xff]
    %v80 = vld [vmem:[#allocation2 + $0x48] sm:$0xff]
    %v81 = vld [vmem:[#allocation2 + $0x50] sm:$0xff]
    %v82 = vld [vmem:[#allocation2 + $0x58] sm:$0xff]
    %v83 = vld [vmem:[#allocation2 + $0x60] sm:$0xff]
    %v84 = vld [vmem:[#allocation2 + $0x68] sm:$0xff]
    %v85 = vld [vmem:[#allocation2 + $0x70] sm:$0xff]
    %v86 = vld [vmem:[#allocation2 + $0x78] sm:$0xff]
    %v87 = vld [vmem:[%s4] sm:$0x1]
    %v89 = vperm.slane %v87, 0
    %91 = vmatpush.msra.mxu0 %v86
    %92 = vmatpush.msra.mxu0 %v85
    %93 = vmatpush.msra.mxu0 %v84
    %94 = vmatpush.msra.mxu0 %v83
    %95 = vmatpush.msra.mxu0 %v82
    %96 = vmatpush.msra.mxu0 %v81
    %97 = vmatpush.msra.mxu0 %v80
    %98 = vmatpush.msra.mxu0 %v79
    %99 = vmatpush.msra.mxu0 %v78
    %100 = vmatpush.msra.mxu0 %v77
    %101 = vmatpush.msra.mxu0 %v76
    %102 = vmatpush.msra.mxu0 %v75
    %103 = vmatpush.msra.mxu0 %v74
    %104 = vmatpush.msra.mxu0 %v73
    %105 = vmatpush.msra.mxu0 %v72
    %106 = vmatpush.msra.mxu0 %v71
    %107 = vmatmul.f32.gmra.mxu0 %v70
    %v108 = vpop.f32.mrf.mxu0
    %v109 = vadd.f32 %v89, %v108
    %110 = vdwg.mxu0
    %vm111 = vcmask 15360
    %112 = vst.msk [vmem:[%s5] sm:$0xff] %vm111, %v109
    // Predicated region
    $region26: #{net_forward.1} parent=1 // pred_check
      _
    $region27: #{net_forward.1} parent=1 // pred_check_branch
      %114 = sbr.rel (0) target = $region29
    $region28: #{net_forward.1} parent=1 // pred_region
      _
    $region29: #{net_forward.1} parent=1 // pred_fallthru
      _
    // Predicated region
    $region30: #{net_forward.1} parent=1 // pred_check
      _
    $region31: #{net_forward.1} parent=1 // pred_check_branch
      %116 = sbr.rel (0) target = $region33
    $region32: #{net_forward.1} parent=1 // pred_region
      _
    $region33: #{net_forward.1} parent=1 // pred_fallthru
      _
    %117 = vsyncpa [#allocation3], 1

</llo_original>
